<compile_context>
chip_gen: v5e
topology: v5e:2x2
jax: 0.10.0
libtpu: 0.0.40
codegen_flags: <defaults>
</compile_context>

<pallas_src>
import functools

import jax
import jax.numpy as jnp
import numpy as np
from jax.experimental import pallas as pl
from jax.experimental.pallas import tpu as pltpu

_LANE = 128


def _mvc_kernel(patches_ref, w_ref, o_ref, *, cin, precision):
    """One (batch, voxel-tile) block per grid step.

    patches_ref: (1, K^3*Cin, P_TILE)  im2col slab, centre tap in rows [0, Cin)
    w_ref      : (Cout, K^3*Cin)       fused weight matrix
    o_ref      : (1, Cout, P_TILE)
    """
    # "log_forward": single fused contraction, accumulated inside the MXU.
    conv = jnp.dot(
        w_ref[...], patches_ref[0],
        precision=precision,
        preferred_element_type=jnp.float32,
    )                                                    # (Cout, P_TILE), lane-dense
    # "exp_forward": exponential map at base point x  ->  x * exp(conv).
    x_center = patches_ref[0, :cin, :]                   # centre tap == original x
    o_ref[0] = (x_center * jnp.exp(conv)).astype(o_ref.dtype)


def intra_voxel_conv(x, weight_mask, *, p_tile_max=2048,
                     precision=jax.lax.Precision.HIGHEST):
    """x: (B, Cin, D, H, W) float32 (NCDHW); weight_mask: (Cout, K, K, K, Cin)."""
    B, cin, D, H, W = x.shape
    cout, K, _, _, cin2 = weight_mask.shape
    assert cin == cin2 and cout == cin, "exp map at base point x requires Cout == Cin"
    pad = K // 2
    P = D * H * W
    KKC = K * K * K * cin

    # Voxel-axis tiling: lane-dense (multiple of 128), bounded for v7x's 64 MiB VMEM.
    p_pad128 = -(-P // _LANE) * _LANE
    P_TILE = min(p_pad128, p_tile_max)
    P_pad = -(-P // P_TILE) * P_TILE
    n_tiles = P_pad // P_TILE

    # --- glue (plain JAX): im2col slab with the centre tap placed first -----
    xp = jnp.pad(x, ((0, 0), (0, 0), (pad, pad), (pad, pad), (pad, pad)))
    taps = []
    for kd in range(K):
        for kh in range(K):
            for kw in range(K):
                taps.append(xp[:, :, kd:kd + D, kh:kh + H, kw:kw + W])
    center = (K // 2) * K * K + (K // 2) * K + (K // 2)
    order = [center] + [t for t in range(K * K * K) if t != center]
    patches = jnp.stack([taps[t] for t in order], axis=1)      # (B, K^3, Cin, D, H, W)
    patches = patches.reshape(B, KKC, P)                       # (B, K^3*Cin, P)
    if P_pad != P:
        patches = jnp.pad(patches, ((0, 0), (0, 0), (0, P_pad - P)))

    w2 = weight_mask.reshape(cout, K * K * K, cin)[:, order, :].reshape(cout, KKC)

    kernel = functools.partial(_mvc_kernel, cin=cin, precision=precision)
    out_flat = pl.pallas_call(
        kernel,
        out_shape=jax.ShapeDtypeStruct((B, cout, P_pad), x.dtype),
        grid_spec=pltpu.PrefetchScalarGridSpec(
            num_scalar_prefetch=0,
            grid=(B, n_tiles),
            in_specs=[
                pl.BlockSpec((1, KKC, P_TILE), lambda b, t: (b, 0, t)),
                pl.BlockSpec((cout, KKC), lambda b, t: (0, 0)),
            ],
            out_specs=pl.BlockSpec((1, cout, P_TILE), lambda b, t: (b, 0, t)),
        ),
        compiler_params=pltpu.CompilerParams(
            dimension_semantics=("parallel", "parallel")),
    )(patches, w2)

    # Already channels-first: just drop the lane padding and restore (D, H, W).
    return out_flat[:, :, :P].reshape(B, cout, D, H, W)


def intra_voxel_conv_ref(x, weight_mask):
    """Pure-JAX reference: out = x * exp(conv3d(x, W)), 'same' padding."""
    wk = jnp.transpose(weight_mask, (0, 4, 1, 2, 3))           # (O, I, kd, kh, kw)
    log_out = jax.lax.conv_general_dilated(
        x, wk, window_strides=(1, 1, 1), padding="SAME",
        dimension_numbers=("NCDHW", "OIDHW", "NCDHW"),
        precision=jax.lax.Precision.HIGHEST)
    return x * jnp.exp(log_out)


if __name__ == "__main__":
    key = jax.random.PRNGKey(0)
    kx, kw = jax.random.split(key)
    B, C, D, H, W, K = 2, 4, 8, 8, 8, 3

    x = jax.random.normal(kx, (B, C, D, H, W), dtype=jnp.float32)
    # Deterministic weights (zero_init=False branch uses torch.rand -> uniform);
    # scaled down so exp() stays well-conditioned for the numerical check.
    weight_mask = 0.05 * jax.random.uniform(kw, (C, K, K, K, C), dtype=jnp.float32)

    run = jax.jit(intra_voxel_conv)
    y = run(x, weight_mask)
    jax.block_until_ready(y)
    assert y.shape == (B, C, D, H, W)

    y_ref = intra_voxel_conv_ref(x, weight_mask)
    err = float(np.max(np.abs(np.asarray(y) - np.asarray(y_ref))))
    assert np.allclose(np.asarray(y), np.asarray(y_ref), rtol=1e-3, atol=1e-3), err

    # Module default (zero_init=True) -> weights are all zeros -> exact identity.
    y_id = run(x, jnp.zeros((C, K, K, K, C), jnp.float32))
    assert np.allclose(np.asarray(y_id), np.asarray(x), rtol=1e-5, atol=1e-5)

    print("KERNEL_OK")
</pallas_src>

<mosaic_0001>
module attributes {stable_mosaic.version = 11 : i64} {
  func.func @_mvc_kernel(%arg0: i32, %arg1: i32, %arg2: memref<1x108x512xf32, #tpu.memory_space<vmem>>, %arg3: memref<4x108xf32, #tpu.memory_space<vmem>>, %arg4: memref<1x4x512xf32, #tpu.memory_space<vmem>>) attributes {dimension_semantics = [#tpu.dimension_semantics<parallel>, #tpu.dimension_semantics<parallel>], iteration_bounds = array<i64: 2, 1>, scalar_prefetch = 0 : i64, scratch_operands = 0 : i64, tpu.core_type = #tpu.core_type<tc>, window_params = [{transform_indices = @transform_0, window_bounds = array<i64: 1, 108, 512>}, {pipeline_mode = #tpu.pipeline_mode<synchronous>, transform_indices = @transform_1, window_bounds = array<i64: 4, 108>}, {transform_indices = @transform_2, window_bounds = array<i64: 1, 4, 512>}]} {
    %c0 = arith.constant 0 : index
    %c0_0 = arith.constant 0 : index
    %0 = vector.load %arg3[%c0, %c0_0] : memref<4x108xf32, #tpu.memory_space<vmem>>, vector<4x108xf32>
    %c0_1 = arith.constant 0 : index
    %c0_2 = arith.constant 0 : index
    %c0_3 = arith.constant 0 : index
    %1 = vector.load %arg2[%c0_1, %c0_2, %c0_3] : memref<1x108x512xf32, #tpu.memory_space<vmem>>, vector<1x108x512xf32>
    %2 = vector.shape_cast %1 : vector<1x108x512xf32> to vector<108x512xf32>
    %cst = arith.constant dense<0.000000e+00> : vector<4x512xf32>
    %3 = tpu.matmul %0, %2, %cst {dimension_numbers = #tpu.dot_dimension_numbers<[1], [0], [0], [1], [0, 0, 1, 1], [], []>, precision = #tpu.contract_precision<fp32>} : vector<4x108xf32>, vector<108x512xf32>, vector<4x512xf32> -> vector<4x512xf32>
    %c0_4 = arith.constant 0 : index
    %c0_5 = arith.constant 0 : index
    %c0_6 = arith.constant 0 : index
    %4 = vector.load %arg2[%c0_4, %c0_5, %c0_6] : memref<1x108x512xf32, #tpu.memory_space<vmem>>, vector<1x4x512xf32>
    %5 = vector.shape_cast %4 : vector<1x4x512xf32> to vector<4x512xf32>
    %6 = math.exp %3 : vector<4x512xf32>
    %7 = arith.mulf %5, %6 : vector<4x512xf32>
    %c0_7 = arith.constant 0 : index
    %c0_8 = arith.constant 0 : index
    %c0_9 = arith.constant 0 : index
    %8 = vector.load %arg4[%c0_7, %c0_8, %c0_9] : memref<1x4x512xf32, #tpu.memory_space<vmem>>, vector<1x4x512xf32>
    %9 = vector.shape_cast %8 : vector<1x4x512xf32> to vector<4x512xf32>
    %10 = vector.shape_cast %7 : vector<4x512xf32> to vector<1x4x512xf32>
    tpu.vector_store %arg4[%c0_7, %c0_8, %c0_9], %10 {strides = array<i32>} : memref<1x4x512xf32, #tpu.memory_space<vmem>>, vector<1x4x512xf32>,
    return
  }
  func.func @transform_0(%arg0: i32, %arg1: i32) -> (i32, i32, i32) {
    %c0_i32 = arith.constant 0 : i32
    %c0_i32_0 = arith.constant 0 : i32
    return %arg0, %c0_i32, %arg1 : i32, i32, i32
  }
  func.func @transform_1(%arg0: i32, %arg1: i32) -> (i32, i32) {
    %c0_i32 = arith.constant 0 : i32
    %c0_i32_0 = arith.constant 0 : i32
    %c0_i32_1 = arith.constant 0 : i32
    return %c0_i32, %c0_i32_0 : i32, i32
  }
  func.func @transform_2(%arg0: i32, %arg1: i32) -> (i32, i32, i32) {
    %c0_i32 = arith.constant 0 : i32
    %c0_i32_0 = arith.constant 0 : i32
    return %arg0, %c0_i32, %arg1 : i32, i32, i32
  }
}

</mosaic_0001>

<llo_original>
// kernel: intra_voxel_conv.1
$region0: #{intra_voxel_conv.1}
  #allocation0 [shape = 'u32[]', space=smem, size = 0x4, offset = 0x4, fixed_abs, tag = 'smem constant byte address 0x4 - core index']
  #allocation1 [shape = 'u32[72,128]{1,0:T(1,128)}', space=vmem, size = 0x9000, scoped, tag = 'internal scratch']
  %s0 = inlined_call_operand.vmem [shape: f32[2,108,512], index: 0, kind: input, shape index: {}]
  %s1 = inlined_call_operand.vmem [shape: f32[4,108], index: 1, kind: input, shape index: {}]
  %s2 = inlined_call_operand.vmem [shape: f32[2,4,512], index: 2, kind: output, shape index: {}]
  %s3 = sld [smem:[#allocation0]]
  $region41: #{intra_voxel_conv.1} parent=0
    _
  %s5 = ssub.s32 1, %s3
  %s6 = scalar_select 0, %s5, %s3
  loop: start=0, step=1, limit=4
  $region2: #{intra_voxel_conv.1} parent=0 // loop_pre_header
    _
  $region3: #{intra_voxel_conv.1} parent=0 // loop_header
    %s8 = sphi 0, %s12
    %p9 = scmp.ge.s32.totalorder %s8, 4
    %s15 = sphi 0, %s27
    %s16 = sphi 0, %s23
    %s17 = sphi 0, %s15
    %s18 = sphi 0, %s16
    %s19 = sphi 0, %s17
    %s20 = sphi 0, %s18
    %s32 = sphi 0, %s34
    %s35 = sphi 0, %s32
    %s36 = sphi 0, %s35
    %s52 = sphi 0, %s36
    %s56 = sphi 0, %s56
    %s58 = sphi 0, %s56
    %s59 = sphi 0, %s58
    %s73 = sphi 0, %s59
    %s81 = sphi 0, %s83
    %s84 = sphi 0, %s81
    %s85 = sphi 0, %s84
    %s101 = sphi 0, %s85
  $region4: #{intra_voxel_conv.1} parent=0 // loop_header_branch
    %11 = sbr.rel (%p9) target = $region8
  $region5: #{intra_voxel_conv.1} parent=0 // loop_body
    %s13 = ssub.s32 %s8, 1
    %s14 = ssub.s32 %s8, 2
    %s21 = sadd.s32 1, %s16
    %p22 = scmp.ge.s32.totalorder %s21, 1
    %s23 = scalar_select %p22, 0, %s21
    %s24 = sadd.s32 1, %s15
    %s25 = scalar_select %p22, %s24, %s15
    %p26 = scmp.ge.s32.totalorder %s25, 2
    %s27 = scalar_select %p26, 0, %s25
    %s28 = ssub.s32 %s15, %s27
    %s29 = ssub.s32 %s16, %s23
    %s30 = sor.u32 %s28, %s29
    %p31 = scmp.eq.s32.totalorder %s30, 0
    %s33 = sadd.s32 %s32, 1
    %s34 = scalar_select %p31, %s32, %s33
    %p37 = pneg %p31
    %p38 = scmp.eq.s32.totalorder %s8, 1
    %p39 = por %p37, %p38
    %p40 = scmp.ne.s32.totalorder %s32, %s35
    %p41 = scmp.eq.s32.totalorder %s8, 0
    %p42 = por %p40, %p41
    %p43 = scmp.ne.s32.totalorder %s32, %s35
    %p44 = scmp.eq.s32.totalorder %s13, 1
    %p45 = por %p43, %p44
    %p46 = scmp.ne.s32.totalorder %s35, %s36
    %p47 = scmp.eq.s32.totalorder %s13, 0
    %p48 = por %p46, %p47
    %p49 = scmp.ne.s32.totalorder %s35, %s36
    %p50 = scmp.eq.s32.totalorder %s14, 1
    %p51 = por %p49, %p50
    %p53 = scmp.ne.s32.totalorder %s36, %s52
    %p54 = scmp.eq.s32.totalorder %s14, 0
    %p55 = por %p53, %p54
    %s57 = sadd.s32 %s56, 1
    %p60 = scmp.eq.s32.totalorder %s8, 1
    %p61 = scmp.ne.s32.totalorder %s56, %s58
    %p62 = scmp.eq.s32.totalorder %s8, 0
    %p63 = por %p61, %p62
    %p64 = scmp.ne.s32.totalorder %s56, %s58
    %p65 = scmp.eq.s32.totalorder %s13, 1
    %p66 = por %p64, %p65
    %p67 = scmp.ne.s32.totalorder %s58, %s59
    %p68 = scmp.eq.s32.totalorder %s13, 0
    %p69 = por %p67, %p68
    %p70 = scmp.ne.s32.totalorder %s58, %s59
    %p71 = scmp.eq.s32.totalorder %s14, 1
    %p72 = por %p70, %p71
    %p74 = scmp.ne.s32.totalorder %s59, %s73
    %p75 = scmp.eq.s32.totalorder %s14, 0
    %p76 = por %p74, %p75
    %s77 = ssub.s32 %s15, %s27
    %s78 = ssub.s32 %s16, %s23
    %s79 = sor.u32 %s77, %s78
    %p80 = scmp.eq.s32.totalorder %s79, 0
    %s82 = sadd.s32 %s81, 1
    %s83 = scalar_select %p80, %s81, %s82
    %p86 = pneg %p80
    %p87 = scmp.eq.s32.totalorder %s8, 1
    %p88 = por %p86, %p87
    %p89 = scmp.ne.s32.totalorder %s81, %s84
    %p90 = scmp.eq.s32.totalorder %s8, 0
    %p91 = por %p89, %p90
    %p92 = scmp.ne.s32.totalorder %s81, %s84
    %p93 = scmp.eq.s32.totalorder %s13, 1
    %p94 = por %p92, %p93
    %p95 = scmp.ne.s32.totalorder %s84, %s85
    %p96 = scmp.eq.s32.totalorder %s13, 0
    %p97 = por %p95, %p96
    %p98 = scmp.ne.s32.totalorder %s84, %s85
    %p99 = scmp.eq.s32.totalorder %s14, 1
    %p100 = por %p98, %p99
    %p102 = scmp.ne.s32.totalorder %s85, %s101
    %p103 = scmp.eq.s32.totalorder %s14, 0
    %p104 = por %p102, %p103
    %p105 = scmp.le.s32.totalorder 1, %s8
    %p106 = scmp.lt.s32.totalorder %s8, 3
    %p107 = pnand %p105, %p106
    %p108 = pneg %p107
    // Predicated region
    $region9: #{intra_voxel_conv.1} parent=5 // pred_check
      _
    $region10: #{intra_voxel_conv.1} parent=5 // pred_check_branch
      %110 = sbr.rel (%p107) target = $region12
    $region11: #{intra_voxel_conv.1} parent=5 // pred_region
      %s111 = ssub.s32 %s8, 1
      // Predicated region
      $region13: #{intra_voxel_conv.1} parent=11 // pred_check
        %p112 = pneg %p69
      $region14: #{intra_voxel_conv.1} parent=11 // pred_check_branch
        %114 = sbr.rel (%p112) target = $region16
      $region15: #{intra_voxel_conv.1} parent=11 // pred_region
        _
      $region16: #{intra_voxel_conv.1} parent=11 // pred_fallthru
        _
    $region12: #{intra_voxel_conv.1} parent=5 // pred_fallthru
      _
    %p115 = scmp.lt.s32.totalorder %s8, 2
    // Predicated region
    $region17: #{intra_voxel_conv.1} parent=5 // pred_check
      %p116 = pneg %p115
    $region18: #{intra_voxel_conv.1} parent=5 // pred_check_branch
      %118 = sbr.rel (%p116) target = $region20
    $region19: #{intra_voxel_conv.1} parent=5 // pred_region
      // Predicated region
      $region21: #{intra_voxel_conv.1} parent=19 // pred_check
        %p119 = pneg %p42
      $region22: #{intra_voxel_conv.1} parent=19 // pred_check_branch
        %121 = sbr.rel (%p119) target = $region24
      $region23: #{intra_voxel_conv.1} parent=19 // pred_region
        %s122 = smul.u32 4, %s16
        %p123 = scmp.lt.s32.totalorder %s15, 1
        %s124 = scalar_select %p123, %s15, 1
        %p125 = scmp.lt.s32.totalorder %s122, 3
        %s126 = scalar_select %p125, %s122, 3
        %s127 = smul.addr %s124, 56
        %s128 = sadd.s32 %s126, %s127
        %s129 = smul.addr %s128, 8
        %s130 = scalar_lea.vmem %s0, %s129
        %s131 = smul.u32 4, %s16
      $region24: #{intra_voxel_conv.1} parent=19 // pred_fallthru
        _
    $region20: #{intra_voxel_conv.1} parent=5 // pred_fallthru
      _
    %p132 = scmp.le.s32.totalorder 1, %s8
    %p133 = scmp.lt.s32.totalorder %s8, 3
    %p134 = pnand %p132, %p133
    %p135 = pneg %p134
    // Predicated region
    $region25: #{intra_voxel_conv.1} parent=5 // pred_check
      _
    $region26: #{intra_voxel_conv.1} parent=5 // pred_check_branch
      %137 = sbr.rel (%p134) target = $region28
    $region27: #{intra_voxel_conv.1} parent=5 // pred_region
      %s138 = ssub.s32 %s8, 1
      %s139 = smul.u32 4, %s18
      %p140 = scmp.lt.s32.totalorder %s17, 1
      %s141 = scalar_select %p140, %s17, 1
      %p142 = scmp.lt.s32.totalorder %s139, 3
      %s143 = scalar_select %p142, %s139, 3
      %s144 = smul.addr %s141, 56
      %s145 = sadd.s32 %s143, %s144
      %s146 = smul.addr %s145, 8
      %s147 = scalar_lea.vmem %s0, %s146
      %p148 = pneg %p48
      %p149 = pneg %p45
      %p150 = pneg %p69
      %p151 = pneg %p66
      %p152 = pneg %p97
      %p153 = pneg %p94
      %s154 = smul.u32 4, %s18
      %p155 = scmp.lt.s32.totalorder %s17, 1
      %s156 = scalar_select %p155, %s17, 1
      %p157 = scmp.lt.s32.totalorder %s154, 3
      %s158 = scalar_select %p157, %s154, 3
      %s159 = smul.addr %s156, 4
      %s160 = sadd.s32 %s158, %s159
      %s161 = smul.addr %s160, 4
      %s162 = scalar_lea.vmem %s2, %s161
      %s163 = smul.u32 4, %s18
      %p164 = scmp.lt.s32.totalorder %s17, 1
      %s165 = scalar_select %p164, %s17, 1
      %p166 = scmp.lt.s32.totalorder %s163, 3
      %s167 = scalar_select %p166, %s163, 3
      %s168 = smul.addr %s165, 56
      %s169 = sadd.s32 %s167, %s168
      %s170 = smul.addr %s169, 8
      %s171 = scalar_lea.vmem %s0, %s170
      %s172 = smul.u32 4, %s18
      %s173 = smul.u32 4, %s18
      %p174 = scmp.lt.s32.totalorder %s17, 1
      %s175 = scalar_select %p174, %s17, 1
      %p176 = scmp.lt.s32.totalorder %s173, 3
      %s177 = scalar_select %p176, %s173, 3
      %s178 = smul.addr %s175, 4
      %s179 = sadd.s32 %s177, %s178
      %s180 = smul.addr %s179, 4
      %s181 = scalar_lea.vmem %s2, %s180
      %s182 = smul.u32 4, %s18
      %v183 = vld [vmem:[%s1] sm:$0xf]
      %v184 = vld [vmem:[%s171] sm:$0xff]
      %v185 = vld [vmem:[%s171 + $0x8] sm:$0xff]
      %v186 = vld [vmem:[%s171 + $0x10] sm:$0xff]
      %v187 = vld [vmem:[%s171 + $0x18] sm:$0xff]
      %v188 = vld [vmem:[%s171 + $0x20] sm:$0xff]
      %v189 = vld [vmem:[%s171 + $0x28] sm:$0xff]
      %v190 = vld [vmem:[%s171 + $0x30] sm:$0xff]
      %v191 = vld [vmem:[%s171 + $0x38] sm:$0xff]
      %v192 = vld [vmem:[%s171 + $0x40] sm:$0xff]
      %v193 = vld [vmem:[%s171 + $0x48] sm:$0xff]
      %v194 = vld [vmem:[%s171 + $0x50] sm:$0xff]
      %v195 = vld [vmem:[%s171 + $0x58] sm:$0xff]
      %v196 = vld [vmem:[%s171 + $0x60] sm:$0xff]
      %v197 = vld [vmem:[%s171 + $0x68] sm:$0xff]
      %v198 = vld [vmem:[%s171 + $0x70] sm:$0xff]
      %v199 = vld [vmem:[%s171 + $0x78] sm:$0xff]
      %v200 = vld [vmem:[%s171 + $0x80] sm:$0xff]
      %v201 = vld [vmem:[%s171 + $0x88] sm:$0xff]
      %v202 = vld [vmem:[%s171 + $0x90] sm:$0xff]
      %v203 = vld [vmem:[%s171 + $0x98] sm:$0xff]
      %v204 = vld [vmem:[%s171 + $0xa0] sm:$0xff]
      %v205 = vld [vmem:[%s171 + $0xa8] sm:$0xff]
      %v206 = vld [vmem:[%s171 + $0xb0] sm:$0xff]
      %v207 = vld [vmem:[%s171 + $0xb8] sm:$0xff]
      %v208 = vld [vmem:[%s171 + $0xc0] sm:$0xff]
      %v209 = vld [vmem:[%s171 + $0xc8] sm:$0xff]
      %v210 = vld [vmem:[%s171 + $0xd0] sm:$0xff]
      %v211 = vld [vmem:[%s171 + $0xd8] sm:$0xff]
      %v212 = vld [vmem:[%s171 + $0xe0] sm:$0xff]
      %v213 = vld [vmem:[%s171 + $0xe8] sm:$0xff]
      %v214 = vld [vmem:[%s171 + $0xf0] sm:$0xff]
      %v215 = vld [vmem:[%s171 + $0xf8] sm:$0xff]
      %v216 = vld [vmem:[%s171 + $0x100] sm:$0xff]
      %v217 = vld [vmem:[%s171 + $0x108] sm:$0xff]
      %v218 = vld [vmem:[%s171 + $0x110] sm:$0xff]
      %v219 = vld [vmem:[%s171 + $0x118] sm:$0xff]
      %v220 = vld [vmem:[%s171 + $0x120] sm:$0xff]
      %v221 = vld [vmem:[%s171 + $0x128] sm:$0xff]
      %v222 = vld [vmem:[%s171 + $0x130] sm:$0xff]
      %v223 = vld [vmem:[%s171 + $0x138] sm:$0xff]
      %v224 = vld [vmem:[%s171 + $0x140] sm:$0xff]
      %v225 = vld [vmem:[%s171 + $0x148] sm:$0xff]
      %v226 = vld [vmem:[%s171 + $0x150] sm:$0xff]
      %v227 = vld [vmem:[%s171 + $0x158] sm:$0xff]
      %v228 = vld [vmem:[%s171 + $0x160] sm:$0xff]
      %v229 = vld [vmem:[%s171 + $0x168] sm:$0xff]
      %v230 = vld [vmem:[%s171 + $0x170] sm:$0xff]
      %v231 = vld [vmem:[%s171 + $0x178] sm:$0xff]
      %v232 = vld [vmem:[%s171 + $0x180] sm:$0xff]
      %v233 = vld [vmem:[%s171 + $0x188] sm:$0xff]
      %v234 = vld [vmem:[%s171 + $0x190] sm:$0xff]
      %v235 = vld [vmem:[%s171 + $0x198] sm:$0xff]
      %v236 = vld [vmem:[%s171 + $0x1a0] sm:$0xf]
      %v237 = vld [vmem:[%s171 + $0x1a8] sm:$0xf]
      %v238 = vld [vmem:[%s171 + $0x1b0] sm:$0xf]
      %v239 = vld [vmem:[%s171 + $0x1b8] sm:$0xf]
      %vm240 = vcmask 883712
      %v242 = vsel %vm240, %v183, 0
      %vm244 = vcmask 1043456
      %v246 = vsel %vm244, %v236, 0
      %v249 = vsel %vm244, %v237, 0
      %v252 = vsel %vm244, %v238, 0
      %v255 = vsel %vm244, %v239, 0
      %257 = vmatpush.msra.mxu0 0.0
      %258 = vmatpush.msra.mxu0 0.0
      %v259 = vand.u32 %v246, 4294901760
      %260 = vmatpush.msra.mxu0 %v259
      %v261 = vand.u32 %v232, 4294901760
      %262 = vmatpush.msra.mxu0 %v261
      %v263 = vand.u32 %v228, 4294901760
      %264 = vmatpush.msra.mxu0 %v263
      %v265 = vand.u32 %v224, 4294901760
      %266 = vmatpush.msra.mxu0 %v265
      %v267 = vand.u32 %v220, 4294901760
      %268 = vmatpush.msra.mxu0 %v267
      %v269 = vand.u32 %v216, 4294901760
      %270 = vmatpush.msra.mxu0 %v269
      %v271 = vand.u32 %v212, 4294901760
      %272 = vmatpush.msra.mxu0 %v271
      %v273 = vand.u32 %v208, 4294901760
      %274 = vmatpush.msra.mxu0 %v273
      %v275 = vand.u32 %v204, 4294901760
      %276 = vmatpush.msra.mxu0 %v275
      %v277 = vand.u32 %v200, 4294901760
      %278 = vmatpush.msra.mxu0 %v277
      %v279 = vand.u32 %v196, 4294901760
      %280 = vmatpush.msra.mxu0 %v279
      %v281 = vand.u32 %v192, 4294901760
      %282 = vmatpush.msra.mxu0 %v281
      %v283 = vand.u32 %v188, 4294901760
      %284 = vmatpush.msra.mxu0 %v283
      %v285 = vand.u32 %v184, 4294901760
      %286 = vmatpush.msra.mxu0 %v285
      %v287 = vand.u32 %v242, 4294901760
      %v288 = vsub.f32 %v242, %v287
      %v289 = vand.u32 %v288, 4294901760
      %v290 = vsub.f32 %v288, %v289
      %v291 = vand.u32 %v290, 4294901760
      %292 = vmatmul.f32.gmra.mxu0 %v291
      %v293 = vpop.f32.mrf.mxu0
      %v294 = vadd.f32 0.0, %v293
      %295 = vdwg.mxu0
      %296 = vmatpush.msra.mxu0 0.0
      %297 = vmatpush.msra.mxu0 0.0
      %v298 = vand.u32 %v246, 4294901760
      %v299 = vsub.f32 %v246, %v298
      %v300 = vand.u32 %v299, 4294901760
      %v301 = vsub.f32 %v299, %v300
      %v302 = vand.u32 %v301, 4294901760
      %303 = vmatpush.msra.mxu0 %v302
      %v304 = vand.u32 %v232, 4294901760
      %v305 = vsub.f32 %v232, %v304
      %v306 = vand.u32 %v305, 4294901760
      %v307 = vsub.f32 %v305, %v306
      %v308 = vand.u32 %v307, 4294901760
      %309 = vmatpush.msra.mxu0 %v308
      %v310 = vand.u32 %v228, 4294901760
      %v311 = vsub.f32 %v228, %v310
      %v312 = vand.u32 %v311, 4294901760
      %v313 = vsub.f32 %v311, %v312
      %v314 = vand.u32 %v313, 4294901760
      %315 = vmatpush.msra.mxu0 %v314
      %v316 = vand.u32 %v224, 4294901760
      %v317 = vsub.f32 %v224, %v316
      %v318 = vand.u32 %v317, 4294901760
      %v319 = vsub.f32 %v317, %v318
      %v320 = vand.u32 %v319, 4294901760
      %321 = vmatpush.msra.mxu0 %v320
      %v322 = vand.u32 %v220, 4294901760
      %v323 = vsub.f32 %v220, %v322
      %v324 = vand.u32 %v323, 4294901760
      %v325 = vsub.f32 %v323, %v324
      %v326 = vand.u32 %v325, 4294901760
      %327 = vmatpush.msra.mxu0 %v326
      %v328 = vand.u32 %v216, 4294901760
      %v329 = vsub.f32 %v216, %v328
      %v330 = vand.u32 %v329, 4294901760
      %v331 = vsub.f32 %v329, %v330
      %v332 = vand.u32 %v331, 4294901760
      %333 = vmatpush.msra.mxu0 %v332
      %v334 = vand.u32 %v212, 4294901760
      %v335 = vsub.f32 %v212, %v334
      %v336 = vand.u32 %v335, 4294901760
      %v337 = vsub.f32 %v335, %v336
      %v338 = vand.u32 %v337, 4294901760
      %339 = vmatpush.msra.mxu0 %v338
      %v340 = vand.u32 %v208, 4294901760
      %v341 = vsub.f32 %v208, %v340
      %v342 = vand.u32 %v341, 4294901760
      %v343 = vsub.f32 %v341, %v342
      %v344 = vand.u32 %v343, 4294901760
      %345 = vmatpush.msra.mxu0 %v344
      %v346 = vand.u32 %v204, 4294901760
      %v347 = vsub.f32 %v204, %v346
      %v348 = vand.u32 %v347, 4294901760
      %v349 = vsub.f32 %v347, %v348
      %v350 = vand.u32 %v349, 4294901760
      %351 = vmatpush.msra.mxu0 %v350
      %v352 = vand.u32 %v200, 4294901760
      %v353 = vsub.f32 %v200, %v352
      %v354 = vand.u32 %v353, 4294901760
      %v355 = vsub.f32 %v353, %v354
      %v356 = vand.u32 %v355, 4294901760
      %357 = vmatpush.msra.mxu0 %v356
      %v358 = vand.u32 %v196, 4294901760
      %v359 = vsub.f32 %v196, %v358
      %v360 = vand.u32 %v359, 4294901760
      %v361 = vsub.f32 %v359, %v360
      %v362 = vand.u32 %v361, 4294901760
      %363 = vmatpush.msra.mxu0 %v362
      %v364 = vand.u32 %v192, 4294901760
      %v365 = vsub.f32 %v192, %v364
      %v366 = vand.u32 %v365, 4294901760
      %v367 = vsub.f32 %v365, %v366
      %v368 = vand.u32 %v367, 4294901760
      %369 = vmatpush.msra.mxu0 %v368
      %v370 = vand.u32 %v188, 4294901760
      %v371 = vsub.f32 %v188, %v370
      %v372 = vand.u32 %v371, 4294901760
      %v373 = vsub.f32 %v371, %v372
      %v374 = vand.u32 %v373, 4294901760
      %375 = vmatpush.msra.mxu0 %v374
      %v376 = vand.u32 %v184, 4294901760
      %v377 = vsub.f32 %v184, %v376
      %v378 = vand.u32 %v377, 4294901760
      %v379 = vsub.f32 %v377, %v378
      %v380 = vand.u32 %v379, 4294901760
      %381 = vmatpush.msra.mxu0 %v380
      %v382 = vand.u32 %v242, 4294901760
      %383 = vmatmul.f32.gmra.mxu0 %v382
      %v384 = vpop.f32.mrf.mxu0
      %v385 = vadd.f32 %v294, %v384
      %386 = vdwg.mxu0
      %387 = vmatpush.msra.mxu0 0.0
      %388 = vmatpush.msra.mxu0 0.0
      %v389 = vand.u32 %v246, 4294901760
      %v390 = vsub.f32 %v246, %v389
      %391 = vmatpush.msra.mxu0 %v390
      %v392 = vand.u32 %v232, 4294901760
      %v393 = vsub.f32 %v232, %v392
      %394 = vmatpush.msra.mxu0 %v393
      %v395 = vand.u32 %v228, 4294901760
      %v396 = vsub.f32 %v228, %v395
      %397 = vmatpush.msra.mxu0 %v396
      %v398 = vand.u32 %v224, 4294901760
      %v399 = vsub.f32 %v224, %v398
      %400 = vmatpush.msra.mxu0 %v399
      %v401 = vand.u32 %v220, 4294901760
      %v402 = vsub.f32 %v220, %v401
      %403 = vmatpush.msra.mxu0 %v402
      %v404 = vand.u32 %v216, 4294901760
      %v405 = vsub.f32 %v216, %v404
      %406 = vmatpush.msra.mxu0 %v405
      %v407 = vand.u32 %v212, 4294901760
      %v408 = vsub.f32 %v212, %v407
      %409 = vmatpush.msra.mxu0 %v408
      %v410 = vand.u32 %v208, 4294901760
      %v411 = vsub.f32 %v208, %v410
      %412 = vmatpush.msra.mxu0 %v411
      %v413 = vand.u32 %v204, 4294901760
      %v414 = vsub.f32 %v204, %v413
      %415 = vmatpush.msra.mxu0 %v414
      %v416 = vand.u32 %v200, 4294901760
      %v417 = vsub.f32 %v200, %v416
      %418 = vmatpush.msra.mxu0 %v417
      %v419 = vand.u32 %v196, 4294901760
      %v420 = vsub.f32 %v196, %v419
      %421 = vmatpush.msra.mxu0 %v420
      %v422 = vand.u32 %v192, 4294901760
      %v423 = vsub.f32 %v192, %v422
      %424 = vmatpush.msra.mxu0 %v423
      %v425 = vand.u32 %v188, 4294901760
      %v426 = vsub.f32 %v188, %v425
      %427 = vmatpush.msra.mxu0 %v426
      %v428 = vand.u32 %v184, 4294901760
      %v429 = vsub.f32 %v184, %v428
      %430 = vmatpush.msra.mxu0 %v429
      %v431 = vand.u32 %v242, 4294901760
      %v432 = vsub.f32 %v242, %v431
      %433 = vmatmul.f32.gmra.mxu0 %v432
      %v434 = vpop.f32.mrf.mxu0
      %v435 = vadd.f32 %v385, %v434
      %436 = vdwg.mxu0
      %437 = vmatpush.msra.mxu0 0.0
      %438 = vmatpush.msra.mxu0 0.0
      %v439 = vand.u32 %v246, 4294901760
      %440 = vmatpush.msra.mxu0 %v439
      %v441 = vand.u32 %v232, 4294901760
      %442 = vmatpush.msra.mxu0 %v441
      %v443 = vand.u32 %v228, 4294901760
      %444 = vmatpush.msra.mxu0 %v443
      %v445 = vand.u32 %v224, 4294901760
      %446 = vmatpush.msra.mxu0 %v445
      %v447 = vand.u32 %v220, 4294901760
      %448 = vmatpush.msra.mxu0 %v447
      %v449 = vand.u32 %v216, 4294901760
      %450 = vmatpush.msra.mxu0 %v449
      %v451 = vand.u32 %v212, 4294901760
      %452 = vmatpush.msra.mxu0 %v451
      %v453 = vand.u32 %v208, 4294901760
      %454 = vmatpush.msra.mxu0 %v453
      %v455 = vand.u32 %v204, 4294901760
      %456 = vmatpush.msra.mxu0 %v455
      %v457 = vand.u32 %v200, 4294901760
      %458 = vmatpush.msra.mxu0 %v457
      %v459 = vand.u32 %v196, 4294901760
      %460 = vmatpush.msra.mxu0 %v459
      %v461 = vand.u32 %v192, 4294901760
      %462 = vmatpush.msra.mxu0 %v461
      %v463 = vand.u32 %v188, 4294901760
      %464 = vmatpush.msra.mxu0 %v463
      %v465 = vand.u32 %v184, 4294901760
      %466 = vmatpush.msra.mxu0 %v465
      %v467 = vand.u32 %v242, 4294901760
      %v468 = vsub.f32 %v242, %v467
      %v469 = vand.u32 %v468, 4294901760
      %470 = vmatmul.f32.gmra.mxu0 %v469
      %v471 = vpop.f32.mrf.mxu0
      %v472 = vadd.f32 %v435, %v471
      %473 = vdwg.mxu0
      %474 = vmatpush.msra.mxu0 0.0
      %475 = vmatpush.msra.mxu0 0.0
      %v476 = vand.u32 %v246, 4294901760
      %v477 = vsub.f32 %v246, %v476
      %v478 = vand.u32 %v477, 4294901760
      %479 = vmatpush.msra.mxu0 %v478
      %v480 = vand.u32 %v232, 4294901760
      %v481 = vsub.f32 %v232, %v480
      %v482 = vand.u32 %v481, 4294901760
      %483 = vmatpush.msra.mxu0 %v482
      %v484 = vand.u32 %v228, 4294901760
      %v485 = vsub.f32 %v228, %v484
      %v486 = vand.u32 %v485, 4294901760
      %487 = vmatpush.msra.mxu0 %v486
      %v488 = vand.u32 %v224, 4294901760
      %v489 = vsub.f32 %v224, %v488
      %v490 = vand.u32 %v489, 4294901760
      %491 = vmatpush.msra.mxu0 %v490
      %v492 = vand.u32 %v220, 4294901760
      %v493 = vsub.f32 %v220, %v492
      %v494 = vand.u32 %v493, 4294901760
      %495 = vmatpush.msra.mxu0 %v494
      %v496 = vand.u32 %v216, 4294901760
      %v497 = vsub.f32 %v216, %v496
      %v498 = vand.u32 %v497, 4294901760
      %499 = vmatpush.msra.mxu0 %v498
      %v500 = vand.u32 %v212, 4294901760
      %v501 = vsub.f32 %v212, %v500
      %v502 = vand.u32 %v501, 4294901760
      %503 = vmatpush.msra.mxu0 %v502
      %v504 = vand.u32 %v208, 4294901760
      %v505 = vsub.f32 %v208, %v504
      %v506 = vand.u32 %v505, 4294901760
      %507 = vmatpush.msra.mxu0 %v506
      %v508 = vand.u32 %v204, 4294901760
      %v509 = vsub.f32 %v204, %v508
      %v510 = vand.u32 %v509, 4294901760
      %511 = vmatpush.msra.mxu0 %v510
      %v512 = vand.u32 %v200, 4294901760
      %v513 = vsub.f32 %v200, %v512
      %v514 = vand.u32 %v513, 4294901760
      %515 = vmatpush.msra.mxu0 %v514
      %v516 = vand.u32 %v196, 4294901760
      %v517 = vsub.f32 %v196, %v516
      %v518 = vand.u32 %v517, 4294901760
      %519 = vmatpush.msra.mxu0 %v518
      %v520 = vand.u32 %v192, 4294901760
      %v521 = vsub.f32 %v192, %v520
      %v522 = vand.u32 %v521, 4294901760
      %523 = vmatpush.msra.mxu0 %v522
      %v524 = vand.u32 %v188, 4294901760
      %v525 = vsub.f32 %v188, %v524
      %v526 = vand.u32 %v525, 4294901760
      %527 = vmatpush.msra.mxu0 %v526
      %v528 = vand.u32 %v184, 4294901760
      %v529 = vsub.f32 %v184, %v528
      %v530 = vand.u32 %v529, 4294901760
      %531 = vmatpush.msra.mxu0 %v530
      %v532 = vand.u32 %v242, 4294901760
      %533 = vmatmul.f32.gmra.mxu0 %v532
      %v534 = vpop.f32.mrf.mxu0
      %v535 = vadd.f32 %v472, %v534
      %536 = vdwg.mxu0
      %537 = vmatpush.msra.mxu0 0.0
      %538 = vmatpush.msra.mxu0 0.0
      %v539 = vand.u32 %v246, 4294901760
      %540 = vmatpush.msra.mxu0 %v539
      %v541 = vand.u32 %v232, 4294901760
      %542 = vmatpush.msra.mxu0 %v541
      %v543 = vand.u32 %v228, 4294901760
      %544 = vmatpush.msra.mxu0 %v543
      %v545 = vand.u32 %v224, 4294901760
      %546 = vmatpush.msra.mxu0 %v545
      %v547 = vand.u32 %v220, 4294901760
      %548 = vmatpush.msra.mxu0 %v547
      %v549 = vand.u32 %v216, 4294901760
      %550 = vmatpush.msra.mxu0 %v549
      %v551 = vand.u32 %v212, 4294901760
      %552 = vmatpush.msra.mxu0 %v551
      %v553 = vand.u32 %v208, 4294901760
      %554 = vmatpush.msra.mxu0 %v553
      %v555 = vand.u32 %v204, 4294901760
      %556 = vmatpush.msra.mxu0 %v555
      %v557 = vand.u32 %v200, 4294901760
      %558 = vmatpush.msra.mxu0 %v557
      %v559 = vand.u32 %v196, 4294901760
      %560 = vmatpush.msra.mxu0 %v559
      %v561 = vand.u32 %v192, 4294901760
      %562 = vmatpush.msra.mxu0 %v561
      %v563 = vand.u32 %v188, 4294901760
      %564 = vmatpush.msra.mxu0 %v563
      %v565 = vand.u32 %v184, 4294901760
      %566 = vmatpush.msra.mxu0 %v565
      %v567 = vand.u32 %v242, 4294901760
      %568 = vmatmul.f32.gmra.mxu0 %v567
      %v569 = vpop.f32.mrf.mxu0
      %v570 = vadd.f32 %v535, %v569
      %571 = vdwg.mxu0
      %572 = vmatpush.msra.mxu0 0.0
      %573 = vmatpush.msra.mxu0 0.0
      %v574 = vand.u32 %v249, 4294901760
      %575 = vmatpush.msra.mxu0 %v574
      %v576 = vand.u32 %v233, 4294901760
      %577 = vmatpush.msra.mxu0 %v576
      %v578 = vand.u32 %v229, 4294901760
      %579 = vmatpush.msra.mxu0 %v578
      %v580 = vand.u32 %v225, 4294901760
      %581 = vmatpush.msra.mxu0 %v580
      %v582 = vand.u32 %v221, 4294901760
      %583 = vmatpush.msra.mxu0 %v582
      %v584 = vand.u32 %v217, 4294901760
      %585 = vmatpush.msra.mxu0 %v584
      %v586 = vand.u32 %v213, 4294901760
      %587 = vmatpush.msra.mxu0 %v586
      %v588 = vand.u32 %v209, 4294901760
      %589 = vmatpush.msra.mxu0 %v588
      %v590 = vand.u32 %v205, 4294901760
      %591 = vmatpush.msra.mxu0 %v590
      %v592 = vand.u32 %v201, 4294901760
      %593 = vmatpush.msra.mxu0 %v592
      %v594 = vand.u32 %v197, 4294901760
      %595 = vmatpush.msra.mxu0 %v594
      %v596 = vand.u32 %v193, 4294901760
      %597 = vmatpush.msra.mxu0 %v596
      %v598 = vand.u32 %v189, 4294901760
      %599 = vmatpush.msra.mxu0 %v598
      %v600 = vand.u32 %v185, 4294901760
      %601 = vmatpush.msra.mxu0 %v600
      %v602 = vand.u32 %v242, 4294901760
      %v603 = vsub.f32 %v242, %v602
      %v604 = vand.u32 %v603, 4294901760
      %v605 = vsub.f32 %v603, %v604
      %v606 = vand.u32 %v605, 4294901760
      %607 = vmatmul.f32.gmra.mxu0 %v606
      %v608 = vpop.f32.mrf.mxu0
      %v609 = vadd.f32 0.0, %v608
      %610 = vdwg.mxu0
      %611 = vmatpush.msra.mxu0 0.0
      %612 = vmatpush.msra.mxu0 0.0
      %v613 = vand.u32 %v249, 4294901760
      %v614 = vsub.f32 %v249, %v613
      %v615 = vand.u32 %v614, 4294901760
      %v616 = vsub.f32 %v614, %v615
      %v617 = vand.u32 %v616, 4294901760
      %618 = vmatpush.msra.mxu0 %v617
      %v619 = vand.u32 %v233, 4294901760
      %v620 = vsub.f32 %v233, %v619
      %v621 = vand.u32 %v620, 4294901760
      %v622 = vsub.f32 %v620, %v621
      %v623 = vand.u32 %v622, 4294901760
      %624 = vmatpush.msra.mxu0 %v623
      %v625 = vand.u32 %v229, 4294901760
      %v626 = vsub.f32 %v229, %v625
      %v627 = vand.u32 %v626, 4294901760
      %v628 = vsub.f32 %v626, %v627
      %v629 = vand.u32 %v628, 4294901760
      %630 = vmatpush.msra.mxu0 %v629
      %v631 = vand.u32 %v225, 4294901760
      %v632 = vsub.f32 %v225, %v631
      %v633 = vand.u32 %v632, 4294901760
      %v634 = vsub.f32 %v632, %v633
      %v635 = vand.u32 %v634, 4294901760
      %636 = vmatpush.msra.mxu0 %v635
      %v637 = vand.u32 %v221, 4294901760
      %v638 = vsub.f32 %v221, %v637
      %v639 = vand.u32 %v638, 4294901760
      %v640 = vsub.f32 %v638, %v639
      %v641 = vand.u32 %v640, 4294901760
      %642 = vmatpush.msra.mxu0 %v641
      %v643 = vand.u32 %v217, 4294901760
      %v644 = vsub.f32 %v217, %v643
      %v645 = vand.u32 %v644, 4294901760
      %v646 = vsub.f32 %v644, %v645
      %v647 = vand.u32 %v646, 4294901760
      %648 = vmatpush.msra.mxu0 %v647
      %v649 = vand.u32 %v213, 4294901760
      %v650 = vsub.f32 %v213, %v649
      %v651 = vand.u32 %v650, 4294901760
      %v652 = vsub.f32 %v650, %v651
      %v653 = vand.u32 %v652, 4294901760
      %654 = vmatpush.msra.mxu0 %v653
      %v655 = vand.u32 %v209, 4294901760
      %v656 = vsub.f32 %v209, %v655
      %v657 = vand.u32 %v656, 4294901760
      %v658 = vsub.f32 %v656, %v657
      %v659 = vand.u32 %v658, 4294901760
      %660 = vmatpush.msra.mxu0 %v659
      %v661 = vand.u32 %v205, 4294901760
      %v662 = vsub.f32 %v205, %v661
      %v663 = vand.u32 %v662, 4294901760
      %v664 = vsub.f32 %v662, %v663
      %v665 = vand.u32 %v664, 4294901760
      %666 = vmatpush.msra.mxu0 %v665
      %v667 = vand.u32 %v201, 4294901760
      %v668 = vsub.f32 %v201, %v667
      %v669 = vand.u32 %v668, 4294901760
      %v670 = vsub.f32 %v668, %v669
      %v671 = vand.u32 %v670, 4294901760
      %672 = vmatpush.msra.mxu0 %v671
      %v673 = vand.u32 %v197, 4294901760
      %v674 = vsub.f32 %v197, %v673
      %v675 = vand.u32 %v674, 4294901760
      %v676 = vsub.f32 %v674, %v675
      %v677 = vand.u32 %v676, 4294901760
      %678 = vmatpush.msra.mxu0 %v677
      %v679 = vand.u32 %v193, 4294901760
      %v680 = vsub.f32 %v193, %v679
      %v681 = vand.u32 %v680, 4294901760
      %v682 = vsub.f32 %v680, %v681
      %v683 = vand.u32 %v682, 4294901760
      %684 = vmatpush.msra.mxu0 %v683
      %v685 = vand.u32 %v189, 4294901760
      %v686 = vsub.f32 %v189, %v685
      %v687 = vand.u32 %v686, 4294901760
      %v688 = vsub.f32 %v686, %v687
      %v689 = vand.u32 %v688, 4294901760
      %690 = vmatpush.msra.mxu0 %v689
      %v691 = vand.u32 %v185, 4294901760
      %v692 = vsub.f32 %v185, %v691
      %v693 = vand.u32 %v692, 4294901760
      %v694 = vsub.f32 %v692, %v693
      %v695 = vand.u32 %v694, 4294901760
      %696 = vmatpush.msra.mxu0 %v695
      %v697 = vand.u32 %v242, 4294901760
      %698 = vmatmul.f32.gmra.mxu0 %v697
      %v699 = vpop.f32.mrf.mxu0
      %v700 = vadd.f32 %v609, %v699
      %701 = vdwg.mxu0
      %702 = vmatpush.msra.mxu0 0.0
      %703 = vmatpush.msra.mxu0 0.0
      %v704 = vand.u32 %v249, 4294901760
      %v705 = vsub.f32 %v249, %v704
      %706 = vmatpush.msra.mxu0 %v705
      %v707 = vand.u32 %v233, 4294901760
      %v708 = vsub.f32 %v233, %v707
      %709 = vmatpush.msra.mxu0 %v708
      %v710 = vand.u32 %v229, 4294901760
      %v711 = vsub.f32 %v229, %v710
      %712 = vmatpush.msra.mxu0 %v711
      %v713 = vand.u32 %v225, 4294901760
      %v714 = vsub.f32 %v225, %v713
      %715 = vmatpush.msra.mxu0 %v714
      %v716 = vand.u32 %v221, 4294901760
      %v717 = vsub.f32 %v221, %v716
      %718 = vmatpush.msra.mxu0 %v717
      %v719 = vand.u32 %v217, 4294901760
      %v720 = vsub.f32 %v217, %v719
      %721 = vmatpush.msra.mxu0 %v720
      %v722 = vand.u32 %v213, 4294901760
      %v723 = vsub.f32 %v213, %v722
      %724 = vmatpush.msra.mxu0 %v723
      %v725 = vand.u32 %v209, 4294901760
      %v726 = vsub.f32 %v209, %v725
      %727 = vmatpush.msra.mxu0 %v726
      %v728 = vand.u32 %v205, 4294901760
      %v729 = vsub.f32 %v205, %v728
      %730 = vmatpush.msra.mxu0 %v729
      %v731 = vand.u32 %v201, 4294901760
      %v732 = vsub.f32 %v201, %v731
      %733 = vmatpush.msra.mxu0 %v732
      %v734 = vand.u32 %v197, 4294901760
      %v735 = vsub.f32 %v197, %v734
      %736 = vmatpush.msra.mxu0 %v735
      %v737 = vand.u32 %v193, 4294901760
      %v738 = vsub.f32 %v193, %v737
      %739 = vmatpush.msra.mxu0 %v738
      %v740 = vand.u32 %v189, 4294901760
      %v741 = vsub.f32 %v189, %v740
      %742 = vmatpush.msra.mxu0 %v741
      %v743 = vand.u32 %v185, 4294901760
      %v744 = vsub.f32 %v185, %v743
      %745 = vmatpush.msra.mxu0 %v744
      %v746 = vand.u32 %v242, 4294901760
      %v747 = vsub.f32 %v242, %v746
      %748 = vmatmul.f32.gmra.mxu0 %v747
      %v749 = vpop.f32.mrf.mxu0
      %v750 = vadd.f32 %v700, %v749
      %751 = vdwg.mxu0
      %752 = vmatpush.msra.mxu0 0.0
      %753 = vmatpush.msra.mxu0 0.0
      %v754 = vand.u32 %v249, 4294901760
      %755 = vmatpush.msra.mxu0 %v754
      %v756 = vand.u32 %v233, 4294901760
      %757 = vmatpush.msra.mxu0 %v756
      %v758 = vand.u32 %v229, 4294901760
      %759 = vmatpush.msra.mxu0 %v758
      %v760 = vand.u32 %v225, 4294901760
      %761 = vmatpush.msra.mxu0 %v760
      %v762 = vand.u32 %v221, 4294901760
      %763 = vmatpush.msra.mxu0 %v762
      %v764 = vand.u32 %v217, 4294901760
      %765 = vmatpush.msra.mxu0 %v764
      %v766 = vand.u32 %v213, 4294901760
      %767 = vmatpush.msra.mxu0 %v766
      %v768 = vand.u32 %v209, 4294901760
      %769 = vmatpush.msra.mxu0 %v768
      %v770 = vand.u32 %v205, 4294901760
      %771 = vmatpush.msra.mxu0 %v770
      %v772 = vand.u32 %v201, 4294901760
      %773 = vmatpush.msra.mxu0 %v772
      %v774 = vand.u32 %v197, 4294901760
      %775 = vmatpush.msra.mxu0 %v774
      %v776 = vand.u32 %v193, 4294901760
      %777 = vmatpush.msra.mxu0 %v776
      %v778 = vand.u32 %v189, 4294901760
      %779 = vmatpush.msra.mxu0 %v778
      %v780 = vand.u32 %v185, 4294901760
      %781 = vmatpush.msra.mxu0 %v780
      %v782 = vand.u32 %v242, 4294901760
      %v783 = vsub.f32 %v242, %v782
      %v784 = vand.u32 %v783, 4294901760
      %785 = vmatmul.f32.gmra.mxu0 %v784
      %v786 = vpop.f32.mrf.mxu0
      %v787 = vadd.f32 %v750, %v786
      %788 = vdwg.mxu0
      %789 = vmatpush.msra.mxu0 0.0
      %790 = vmatpush.msra.mxu0 0.0
      %v791 = vand.u32 %v249, 4294901760
      %v792 = vsub.f32 %v249, %v791
      %v793 = vand.u32 %v792, 4294901760
      %794 = vmatpush.msra.mxu0 %v793
      %v795 = vand.u32 %v233, 4294901760
      %v796 = vsub.f32 %v233, %v795
      %v797 = vand.u32 %v796, 4294901760
      %798 = vmatpush.msra.mxu0 %v797
      %v799 = vand.u32 %v229, 4294901760
      %v800 = vsub.f32 %v229, %v799
      %v801 = vand.u32 %v800, 4294901760
      %802 = vmatpush.msra.mxu0 %v801
      %v803 = vand.u32 %v225, 4294901760
      %v804 = vsub.f32 %v225, %v803
      %v805 = vand.u32 %v804, 4294901760
      %806 = vmatpush.msra.mxu0 %v805
      %v807 = vand.u32 %v221, 4294901760
      %v808 = vsub.f32 %v221, %v807
      %v809 = vand.u32 %v808, 4294901760
      %810 = vmatpush.msra.mxu0 %v809
      %v811 = vand.u32 %v217, 4294901760
      %v812 = vsub.f32 %v217, %v811
      %v813 = vand.u32 %v812, 4294901760
      %814 = vmatpush.msra.mxu0 %v813
      %v815 = vand.u32 %v213, 4294901760
      %v816 = vsub.f32 %v213, %v815
      %v817 = vand.u32 %v816, 4294901760
      %818 = vmatpush.msra.mxu0 %v817
      %v819 = vand.u32 %v209, 4294901760
      %v820 = vsub.f32 %v209, %v819
      %v821 = vand.u32 %v820, 4294901760
      %822 = vmatpush.msra.mxu0 %v821
      %v823 = vand.u32 %v205, 4294901760
      %v824 = vsub.f32 %v205, %v823
      %v825 = vand.u32 %v824, 4294901760
      %826 = vmatpush.msra.mxu0 %v825
      %v827 = vand.u32 %v201, 4294901760
      %v828 = vsub.f32 %v201, %v827
      %v829 = vand.u32 %v828, 4294901760
      %830 = vmatpush.msra.mxu0 %v829
      %v831 = vand.u32 %v197, 4294901760
      %v832 = vsub.f32 %v197, %v831
      %v833 = vand.u32 %v832, 4294901760
      %834 = vmatpush.msra.mxu0 %v833
      %v835 = vand.u32 %v193, 4294901760
      %v836 = vsub.f32 %v193, %v835
      %v837 = vand.u32 %v836, 4294901760
      %838 = vmatpush.msra.mxu0 %v837
      %v839 = vand.u32 %v189, 4294901760
      %v840 = vsub.f32 %v189, %v839
      %v841 = vand.u32 %v840, 4294901760
      %842 = vmatpush.msra.mxu0 %v841
      %v843 = vand.u32 %v185, 4294901760
      %v844 = vsub.f32 %v185, %v843
      %v845 = vand.u32 %v844, 4294901760
      %846 = vmatpush.msra.mxu0 %v845
      %v847 = vand.u32 %v242, 4294901760
      %848 = vmatmul.f32.gmra.mxu0 %v847
      %v849 = vpop.f32.mrf.mxu0
      %v850 = vadd.f32 %v787, %v849
      %851 = vdwg.mxu0
      %852 = vmatpush.msra.mxu0 0.0
      %853 = vmatpush.msra.mxu0 0.0
      %v854 = vand.u32 %v249, 4294901760
      %855 = vmatpush.msra.mxu0 %v854
      %v856 = vand.u32 %v233, 4294901760
      %857 = vmatpush.msra.mxu0 %v856
      %v858 = vand.u32 %v229, 4294901760
      %859 = vmatpush.msra.mxu0 %v858
      %v860 = vand.u32 %v225, 4294901760
      %861 = vmatpush.msra.mxu0 %v860
      %v862 = vand.u32 %v221, 4294901760
      %863 = vmatpush.msra.mxu0 %v862
      %v864 = vand.u32 %v217, 4294901760
      %865 = vmatpush.msra.mxu0 %v864
      %v866 = vand.u32 %v213, 4294901760
      %867 = vmatpush.msra.mxu0 %v866
      %v868 = vand.u32 %v209, 4294901760
      %869 = vmatpush.msra.mxu0 %v868
      %v870 = vand.u32 %v205, 4294901760
      %871 = vmatpush.msra.mxu0 %v870
      %v872 = vand.u32 %v201, 4294901760
      %873 = vmatpush.msra.mxu0 %v872
      %v874 = vand.u32 %v197, 4294901760
      %875 = vmatpush.msra.mxu0 %v874
      %v876 = vand.u32 %v193, 4294901760
      %877 = vmatpush.msra.mxu0 %v876
      %v878 = vand.u32 %v189, 4294901760
      %879 = vmatpush.msra.mxu0 %v878
      %v880 = vand.u32 %v185, 4294901760
      %881 = vmatpush.msra.mxu0 %v880
      %v882 = vand.u32 %v242, 4294901760
      %883 = vmatmul.f32.gmra.mxu0 %v882
      %v884 = vpop.f32.mrf.mxu0
      %v885 = vadd.f32 %v850, %v884
      %886 = vdwg.mxu0
      %887 = vmatpush.msra.mxu0 0.0
      %888 = vmatpush.msra.mxu0 0.0
      %v889 = vand.u32 %v252, 4294901760
      %890 = vmatpush.msra.mxu0 %v889
      %v891 = vand.u32 %v234, 4294901760
      %892 = vmatpush.msra.mxu0 %v891
      %v893 = vand.u32 %v230, 4294901760
      %894 = vmatpush.msra.mxu0 %v893
      %v895 = vand.u32 %v226, 4294901760
      %896 = vmatpush.msra.mxu0 %v895
      %v897 = vand.u32 %v222, 4294901760
      %898 = vmatpush.msra.mxu0 %v897
      %v899 = vand.u32 %v218, 4294901760
      %900 = vmatpush.msra.mxu0 %v899
      %v901 = vand.u32 %v214, 4294901760
      %902 = vmatpush.msra.mxu0 %v901
      %v903 = vand.u32 %v210, 4294901760
      %904 = vmatpush.msra.mxu0 %v903
      %v905 = vand.u32 %v206, 4294901760
      %906 = vmatpush.msra.mxu0 %v905
      %v907 = vand.u32 %v202, 4294901760
      %908 = vmatpush.msra.mxu0 %v907
      %v909 = vand.u32 %v198, 4294901760
      %910 = vmatpush.msra.mxu0 %v909
      %v911 = vand.u32 %v194, 4294901760
      %912 = vmatpush.msra.mxu0 %v911
      %v913 = vand.u32 %v190, 4294901760
      %914 = vmatpush.msra.mxu0 %v913
      %v915 = vand.u32 %v186, 4294901760
      %916 = vmatpush.msra.mxu0 %v915
      %v917 = vand.u32 %v242, 4294901760
      %v918 = vsub.f32 %v242, %v917
      %v919 = vand.u32 %v918, 4294901760
      %v920 = vsub.f32 %v918, %v919
      %v921 = vand.u32 %v920, 4294901760
      %922 = vmatmul.f32.gmra.mxu0 %v921
      %v923 = vpop.f32.mrf.mxu0
      %v924 = vadd.f32 0.0, %v923
      %925 = vdwg.mxu0
      %926 = vmatpush.msra.mxu0 0.0
      %927 = vmatpush.msra.mxu0 0.0
      %v928 = vand.u32 %v252, 4294901760
      %v929 = vsub.f32 %v252, %v928
      %v930 = vand.u32 %v929, 4294901760
      %v931 = vsub.f32 %v929, %v930
      %v932 = vand.u32 %v931, 4294901760
      %933 = vmatpush.msra.mxu0 %v932
      %v934 = vand.u32 %v234, 4294901760
      %v935 = vsub.f32 %v234, %v934
      %v936 = vand.u32 %v935, 4294901760
      %v937 = vsub.f32 %v935, %v936
      %v938 = vand.u32 %v937, 4294901760
      %939 = vmatpush.msra.mxu0 %v938
      %v940 = vand.u32 %v230, 4294901760
      %v941 = vsub.f32 %v230, %v940
      %v942 = vand.u32 %v941, 4294901760
      %v943 = vsub.f32 %v941, %v942
      %v944 = vand.u32 %v943, 4294901760
      %945 = vmatpush.msra.mxu0 %v944
      %v946 = vand.u32 %v226, 4294901760
      %v947 = vsub.f32 %v226, %v946
      %v948 = vand.u32 %v947, 4294901760
      %v949 = vsub.f32 %v947, %v948
      %v950 = vand.u32 %v949, 4294901760
      %951 = vmatpush.msra.mxu0 %v950
      %v952 = vand.u32 %v222, 4294901760
      %v953 = vsub.f32 %v222, %v952
      %v954 = vand.u32 %v953, 4294901760
      %v955 = vsub.f32 %v953, %v954
      %v956 = vand.u32 %v955, 4294901760
      %957 = vmatpush.msra.mxu0 %v956
      %v958 = vand.u32 %v218, 4294901760
      %v959 = vsub.f32 %v218, %v958
      %v960 = vand.u32 %v959, 4294901760
      %v961 = vsub.f32 %v959, %v960
      %v962 = vand.u32 %v961, 4294901760
      %963 = vmatpush.msra.mxu0 %v962
      %v964 = vand.u32 %v214, 4294901760
      %v965 = vsub.f32 %v214, %v964
      %v966 = vand.u32 %v965, 4294901760
      %v967 = vsub.f32 %v965, %v966
      %v968 = vand.u32 %v967, 4294901760
      %969 = vmatpush.msra.mxu0 %v968
      %v970 = vand.u32 %v210, 4294901760
      %v971 = vsub.f32 %v210, %v970
      %v972 = vand.u32 %v971, 4294901760
      %v973 = vsub.f32 %v971, %v972
      %v974 = vand.u32 %v973, 4294901760
      %975 = vmatpush.msra.mxu0 %v974
      %v976 = vand.u32 %v206, 4294901760
      %v977 = vsub.f32 %v206, %v976
      %v978 = vand.u32 %v977, 4294901760
      %v979 = vsub.f32 %v977, %v978
      %v980 = vand.u32 %v979, 4294901760
      %981 = vmatpush.msra.mxu0 %v980
      %v982 = vand.u32 %v202, 4294901760
      %v983 = vsub.f32 %v202, %v982
      %v984 = vand.u32 %v983, 4294901760
      %v985 = vsub.f32 %v983, %v984
      %v986 = vand.u32 %v985, 4294901760
      %987 = vmatpush.msra.mxu0 %v986
      %v988 = vand.u32 %v198, 4294901760
      %v989 = vsub.f32 %v198, %v988
      %v990 = vand.u32 %v989, 4294901760
      %v991 = vsub.f32 %v989, %v990
      %v992 = vand.u32 %v991, 4294901760
      %993 = vmatpush.msra.mxu0 %v992
      %v994 = vand.u32 %v194, 4294901760
      %v995 = vsub.f32 %v194, %v994
      %v996 = vand.u32 %v995, 4294901760
      %v997 = vsub.f32 %v995, %v996
      %v998 = vand.u32 %v997, 4294901760
      %999 = vmatpush.msra.mxu0 %v998
      %v1000 = vand.u32 %v190, 4294901760
      %v1001 = vsub.f32 %v190, %v1000
      %v1002 = vand.u32 %v1001, 4294901760
      %v1003 = vsub.f32 %v1001, %v1002
      %v1004 = vand.u32 %v1003, 4294901760
      %1005 = vmatpush.msra.mxu0 %v1004
      %v1006 = vand.u32 %v186, 4294901760
      %v1007 = vsub.f32 %v186, %v1006
      %v1008 = vand.u32 %v1007, 4294901760
      %v1009 = vsub.f32 %v1007, %v1008
      %v1010 = vand.u32 %v1009, 4294901760
      %1011 = vmatpush.msra.mxu0 %v1010
      %v1012 = vand.u32 %v242, 4294901760
      %1013 = vmatmul.f32.gmra.mxu0 %v1012
      %v1014 = vpop.f32.mrf.mxu0
      %v1015 = vadd.f32 %v924, %v1014
      %1016 = vdwg.mxu0
      %1017 = vmatpush.msra.mxu0 0.0
      %1018 = vmatpush.msra.mxu0 0.0
      %v1019 = vand.u32 %v252, 4294901760
      %v1020 = vsub.f32 %v252, %v1019
      %1021 = vmatpush.msra.mxu0 %v1020
      %v1022 = vand.u32 %v234, 4294901760
      %v1023 = vsub.f32 %v234, %v1022
      %1024 = vmatpush.msra.mxu0 %v1023
      %v1025 = vand.u32 %v230, 4294901760
      %v1026 = vsub.f32 %v230, %v1025
      %1027 = vmatpush.msra.mxu0 %v1026
      %v1028 = vand.u32 %v226, 4294901760
      %v1029 = vsub.f32 %v226, %v1028
      %1030 = vmatpush.msra.mxu0 %v1029
      %v1031 = vand.u32 %v222, 4294901760
      %v1032 = vsub.f32 %v222, %v1031
      %1033 = vmatpush.msra.mxu0 %v1032
      %v1034 = vand.u32 %v218, 4294901760
      %v1035 = vsub.f32 %v218, %v1034
      %1036 = vmatpush.msra.mxu0 %v1035
      %v1037 = vand.u32 %v214, 4294901760
      %v1038 = vsub.f32 %v214, %v1037
      %1039 = vmatpush.msra.mxu0 %v1038
      %v1040 = vand.u32 %v210, 4294901760
      %v1041 = vsub.f32 %v210, %v1040
      %1042 = vmatpush.msra.mxu0 %v1041
      %v1043 = vand.u32 %v206, 4294901760
      %v1044 = vsub.f32 %v206, %v1043
      %1045 = vmatpush.msra.mxu0 %v1044
      %v1046 = vand.u32 %v202, 4294901760
      %v1047 = vsub.f32 %v202, %v1046
      %1048 = vmatpush.msra.mxu0 %v1047
      %v1049 = vand.u32 %v198, 4294901760
      %v1050 = vsub.f32 %v198, %v1049
      %1051 = vmatpush.msra.mxu0 %v1050
      %v1052 = vand.u32 %v194, 4294901760
      %v1053 = vsub.f32 %v194, %v1052
      %1054 = vmatpush.msra.mxu0 %v1053
      %v1055 = vand.u32 %v190, 4294901760
      %v1056 = vsub.f32 %v190, %v1055
      %1057 = vmatpush.msra.mxu0 %v1056
      %v1058 = vand.u32 %v186, 4294901760
      %v1059 = vsub.f32 %v186, %v1058
      %1060 = vmatpush.msra.mxu0 %v1059
      %v1061 = vand.u32 %v242, 4294901760
      %v1062 = vsub.f32 %v242, %v1061
      %1063 = vmatmul.f32.gmra.mxu0 %v1062
      %v1064 = vpop.f32.mrf.mxu0
      %v1065 = vadd.f32 %v1015, %v1064
      %1066 = vdwg.mxu0
      %1067 = vmatpush.msra.mxu0 0.0
      %1068 = vmatpush.msra.mxu0 0.0
      %v1069 = vand.u32 %v252, 4294901760
      %1070 = vmatpush.msra.mxu0 %v1069
      %v1071 = vand.u32 %v234, 4294901760
      %1072 = vmatpush.msra.mxu0 %v1071
      %v1073 = vand.u32 %v230, 4294901760
      %1074 = vmatpush.msra.mxu0 %v1073
      %v1075 = vand.u32 %v226, 4294901760
      %1076 = vmatpush.msra.mxu0 %v1075
      %v1077 = vand.u32 %v222, 4294901760
      %1078 = vmatpush.msra.mxu0 %v1077
      %v1079 = vand.u32 %v218, 4294901760
      %1080 = vmatpush.msra.mxu0 %v1079
      %v1081 = vand.u32 %v214, 4294901760
      %1082 = vmatpush.msra.mxu0 %v1081
      %v1083 = vand.u32 %v210, 4294901760
      %1084 = vmatpush.msra.mxu0 %v1083
      %v1085 = vand.u32 %v206, 4294901760
      %1086 = vmatpush.msra.mxu0 %v1085
      %v1087 = vand.u32 %v202, 4294901760
      %1088 = vmatpush.msra.mxu0 %v1087
      %v1089 = vand.u32 %v198, 4294901760
      %1090 = vmatpush.msra.mxu0 %v1089
      %v1091 = vand.u32 %v194, 4294901760
      %1092 = vmatpush.msra.mxu0 %v1091
      %v1093 = vand.u32 %v190, 4294901760
      %1094 = vmatpush.msra.mxu0 %v1093
      %v1095 = vand.u32 %v186, 4294901760
      %1096 = vmatpush.msra.mxu0 %v1095
      %v1097 = vand.u32 %v242, 4294901760
      %v1098 = vsub.f32 %v242, %v1097
      %v1099 = vand.u32 %v1098, 4294901760
      %1100 = vmatmul.f32.gmra.mxu0 %v1099
      %v1101 = vpop.f32.mrf.mxu0
      %v1102 = vadd.f32 %v1065, %v1101
      %1103 = vdwg.mxu0
      %1104 = vmatpush.msra.mxu0 0.0
      %1105 = vmatpush.msra.mxu0 0.0
      %v1106 = vand.u32 %v252, 4294901760
      %v1107 = vsub.f32 %v252, %v1106
      %v1108 = vand.u32 %v1107, 4294901760
      %1109 = vmatpush.msra.mxu0 %v1108
      %v1110 = vand.u32 %v234, 4294901760
      %v1111 = vsub.f32 %v234, %v1110
      %v1112 = vand.u32 %v1111, 4294901760
      %1113 = vmatpush.msra.mxu0 %v1112
      %v1114 = vand.u32 %v230, 4294901760
      %v1115 = vsub.f32 %v230, %v1114
      %v1116 = vand.u32 %v1115, 4294901760
      %1117 = vmatpush.msra.mxu0 %v1116
      %v1118 = vand.u32 %v226, 4294901760
      %v1119 = vsub.f32 %v226, %v1118
      %v1120 = vand.u32 %v1119, 4294901760
      %1121 = vmatpush.msra.mxu0 %v1120
      %v1122 = vand.u32 %v222, 4294901760
      %v1123 = vsub.f32 %v222, %v1122
      %v1124 = vand.u32 %v1123, 4294901760
      %1125 = vmatpush.msra.mxu0 %v1124
      %v1126 = vand.u32 %v218, 4294901760
      %v1127 = vsub.f32 %v218, %v1126
      %v1128 = vand.u32 %v1127, 4294901760
      %1129 = vmatpush.msra.mxu0 %v1128
      %v1130 = vand.u32 %v214, 4294901760
      %v1131 = vsub.f32 %v214, %v1130
      %v1132 = vand.u32 %v1131, 4294901760
      %1133 = vmatpush.msra.mxu0 %v1132
      %v1134 = vand.u32 %v210, 4294901760
      %v1135 = vsub.f32 %v210, %v1134
      %v1136 = vand.u32 %v1135, 4294901760
      %1137 = vmatpush.msra.mxu0 %v1136
      %v1138 = vand.u32 %v206, 4294901760
      %v1139 = vsub.f32 %v206, %v1138
      %v1140 = vand.u32 %v1139, 4294901760
      %1141 = vmatpush.msra.mxu0 %v1140
      %v1142 = vand.u32 %v202, 4294901760
      %v1143 = vsub.f32 %v202, %v1142
      %v1144 = vand.u32 %v1143, 4294901760
      %1145 = vmatpush.msra.mxu0 %v1144
      %v1146 = vand.u32 %v198, 4294901760
      %v1147 = vsub.f32 %v198, %v1146
      %v1148 = vand.u32 %v1147, 4294901760
      %1149 = vmatpush.msra.mxu0 %v1148
      %v1150 = vand.u32 %v194, 4294901760
      %v1151 = vsub.f32 %v194, %v1150
      %v1152 = vand.u32 %v1151, 4294901760
      %1153 = vmatpush.msra.mxu0 %v1152
      %v1154 = vand.u32 %v190, 4294901760
      %v1155 = vsub.f32 %v190, %v1154
      %v1156 = vand.u32 %v1155, 4294901760
      %1157 = vmatpush.msra.mxu0 %v1156
      %v1158 = vand.u32 %v186, 4294901760
      %v1159 = vsub.f32 %v186, %v1158
      %v1160 = vand.u32 %v1159, 4294901760
      %1161 = vmatpush.msra.mxu0 %v1160
      %v1162 = vand.u32 %v242, 4294901760
      %1163 = vmatmul.f32.gmra.mxu0 %v1162
      %v1164 = vpop.f32.mrf.mxu0
      %v1165 = vadd.f32 %v1102, %v1164
      %1166 = vdwg.mxu0
      %1167 = vmatpush.msra.mxu0 0.0
      %1168 = vmatpush.msra.mxu0 0.0
      %v1169 = vand.u32 %v252, 4294901760
      %1170 = vmatpush.msra.mxu0 %v1169
      %v1171 = vand.u32 %v234, 4294901760
      %1172 = vmatpush.msra.mxu0 %v1171
      %v1173 = vand.u32 %v230, 4294901760
      %1174 = vmatpush.msra.mxu0 %v1173
      %v1175 = vand.u32 %v226, 4294901760
      %1176 = vmatpush.msra.mxu0 %v1175
      %v1177 = vand.u32 %v222, 4294901760
      %1178 = vmatpush.msra.mxu0 %v1177
      %v1179 = vand.u32 %v218, 4294901760
      %1180 = vmatpush.msra.mxu0 %v1179
      %v1181 = vand.u32 %v214, 4294901760
      %1182 = vmatpush.msra.mxu0 %v1181
      %v1183 = vand.u32 %v210, 4294901760
      %1184 = vmatpush.msra.mxu0 %v1183
      %v1185 = vand.u32 %v206, 4294901760
      %1186 = vmatpush.msra.mxu0 %v1185
      %v1187 = vand.u32 %v202, 4294901760
      %1188 = vmatpush.msra.mxu0 %v1187
      %v1189 = vand.u32 %v198, 4294901760
      %1190 = vmatpush.msra.mxu0 %v1189
      %v1191 = vand.u32 %v194, 4294901760
      %1192 = vmatpush.msra.mxu0 %v1191
      %v1193 = vand.u32 %v190, 4294901760
      %1194 = vmatpush.msra.mxu0 %v1193
      %v1195 = vand.u32 %v186, 4294901760
      %1196 = vmatpush.msra.mxu0 %v1195
      %v1197 = vand.u32 %v242, 4294901760
      %1198 = vmatmul.f32.gmra.mxu0 %v1197
      %v1199 = vpop.f32.mrf.mxu0
      %v1200 = vadd.f32 %v1165, %v1199
      %1201 = vdwg.mxu0
      %1202 = vmatpush.msra.mxu0 0.0
      %1203 = vmatpush.msra.mxu0 0.0
      %v1204 = vand.u32 %v255, 4294901760
      %1205 = vmatpush.msra.mxu0 %v1204
      %v1206 = vand.u32 %v235, 4294901760
      %1207 = vmatpush.msra.mxu0 %v1206
      %v1208 = vand.u32 %v231, 4294901760
      %1209 = vmatpush.msra.mxu0 %v1208
      %v1210 = vand.u32 %v227, 4294901760
      %1211 = vmatpush.msra.mxu0 %v1210
      %v1212 = vand.u32 %v223, 4294901760
      %1213 = vmatpush.msra.mxu0 %v1212
      %v1214 = vand.u32 %v219, 4294901760
      %1215 = vmatpush.msra.mxu0 %v1214
      %v1216 = vand.u32 %v215, 4294901760
      %1217 = vmatpush.msra.mxu0 %v1216
      %v1218 = vand.u32 %v211, 4294901760
      %1219 = vmatpush.msra.mxu0 %v1218
      %v1220 = vand.u32 %v207, 4294901760
      %1221 = vmatpush.msra.mxu0 %v1220
      %v1222 = vand.u32 %v203, 4294901760
      %1223 = vmatpush.msra.mxu0 %v1222
      %v1224 = vand.u32 %v199, 4294901760
      %1225 = vmatpush.msra.mxu0 %v1224
      %v1226 = vand.u32 %v195, 4294901760
      %1227 = vmatpush.msra.mxu0 %v1226
      %v1228 = vand.u32 %v191, 4294901760
      %1229 = vmatpush.msra.mxu0 %v1228
      %v1230 = vand.u32 %v187, 4294901760
      %1231 = vmatpush.msra.mxu0 %v1230
      %v1232 = vand.u32 %v242, 4294901760
      %v1233 = vsub.f32 %v242, %v1232
      %v1234 = vand.u32 %v1233, 4294901760
      %v1235 = vsub.f32 %v1233, %v1234
      %v1236 = vand.u32 %v1235, 4294901760
      %1237 = vmatmul.f32.gmra.mxu0 %v1236
      %v1238 = vpop.f32.mrf.mxu0
      %v1239 = vadd.f32 0.0, %v1238
      %1240 = vdwg.mxu0
      %1241 = vmatpush.msra.mxu0 0.0
      %1242 = vmatpush.msra.mxu0 0.0
      %v1243 = vand.u32 %v255, 4294901760
      %v1244 = vsub.f32 %v255, %v1243
      %v1245 = vand.u32 %v1244, 4294901760
      %v1246 = vsub.f32 %v1244, %v1245
      %v1247 = vand.u32 %v1246, 4294901760
      %1248 = vmatpush.msra.mxu0 %v1247
      %v1249 = vand.u32 %v235, 4294901760
      %v1250 = vsub.f32 %v235, %v1249
      %v1251 = vand.u32 %v1250, 4294901760
      %v1252 = vsub.f32 %v1250, %v1251
      %v1253 = vand.u32 %v1252, 4294901760
      %1254 = vmatpush.msra.mxu0 %v1253
      %v1255 = vand.u32 %v231, 4294901760
      %v1256 = vsub.f32 %v231, %v1255
      %v1257 = vand.u32 %v1256, 4294901760
      %v1258 = vsub.f32 %v1256, %v1257
      %v1259 = vand.u32 %v1258, 4294901760
      %1260 = vmatpush.msra.mxu0 %v1259
      %v1261 = vand.u32 %v227, 4294901760
      %v1262 = vsub.f32 %v227, %v1261
      %v1263 = vand.u32 %v1262, 4294901760
      %v1264 = vsub.f32 %v1262, %v1263
      %v1265 = vand.u32 %v1264, 4294901760
      %1266 = vmatpush.msra.mxu0 %v1265
      %v1267 = vand.u32 %v223, 4294901760
      %v1268 = vsub.f32 %v223, %v1267
      %v1269 = vand.u32 %v1268, 4294901760
      %v1270 = vsub.f32 %v1268, %v1269
      %v1271 = vand.u32 %v1270, 4294901760
      %1272 = vmatpush.msra.mxu0 %v1271
      %v1273 = vand.u32 %v219, 4294901760
      %v1274 = vsub.f32 %v219, %v1273
      %v1275 = vand.u32 %v1274, 4294901760
      %v1276 = vsub.f32 %v1274, %v1275
      %v1277 = vand.u32 %v1276, 4294901760
      %1278 = vmatpush.msra.mxu0 %v1277
      %v1279 = vand.u32 %v215, 4294901760
      %v1280 = vsub.f32 %v215, %v1279
      %v1281 = vand.u32 %v1280, 4294901760
      %v1282 = vsub.f32 %v1280, %v1281
      %v1283 = vand.u32 %v1282, 4294901760
      %1284 = vmatpush.msra.mxu0 %v1283
      %v1285 = vand.u32 %v211, 4294901760
      %v1286 = vsub.f32 %v211, %v1285
      %v1287 = vand.u32 %v1286, 4294901760
      %v1288 = vsub.f32 %v1286, %v1287
      %v1289 = vand.u32 %v1288, 4294901760
      %1290 = vmatpush.msra.mxu0 %v1289
      %v1291 = vand.u32 %v207, 4294901760
      %v1292 = vsub.f32 %v207, %v1291
      %v1293 = vand.u32 %v1292, 4294901760
      %v1294 = vsub.f32 %v1292, %v1293
      %v1295 = vand.u32 %v1294, 4294901760
      %1296 = vmatpush.msra.mxu0 %v1295
      %v1297 = vand.u32 %v203, 4294901760
      %v1298 = vsub.f32 %v203, %v1297
      %v1299 = vand.u32 %v1298, 4294901760
      %v1300 = vsub.f32 %v1298, %v1299
      %v1301 = vand.u32 %v1300, 4294901760
      %1302 = vmatpush.msra.mxu0 %v1301
      %v1303 = vand.u32 %v199, 4294901760
      %v1304 = vsub.f32 %v199, %v1303
      %v1305 = vand.u32 %v1304, 4294901760
      %v1306 = vsub.f32 %v1304, %v1305
      %v1307 = vand.u32 %v1306, 4294901760
      %1308 = vmatpush.msra.mxu0 %v1307
      %v1309 = vand.u32 %v195, 4294901760
      %v1310 = vsub.f32 %v195, %v1309
      %v1311 = vand.u32 %v1310, 4294901760
      %v1312 = vsub.f32 %v1310, %v1311
      %v1313 = vand.u32 %v1312, 4294901760
      %1314 = vmatpush.msra.mxu0 %v1313
      %v1315 = vand.u32 %v191, 4294901760
      %v1316 = vsub.f32 %v191, %v1315
      %v1317 = vand.u32 %v1316, 4294901760
      %v1318 = vsub.f32 %v1316, %v1317
      %v1319 = vand.u32 %v1318, 4294901760
      %1320 = vmatpush.msra.mxu0 %v1319
      %v1321 = vand.u32 %v187, 4294901760
      %v1322 = vsub.f32 %v187, %v1321
      %v1323 = vand.u32 %v1322, 4294901760
      %v1324 = vsub.f32 %v1322, %v1323
      %v1325 = vand.u32 %v1324, 4294901760
      %1326 = vmatpush.msra.mxu0 %v1325
      %v1327 = vand.u32 %v242, 4294901760
      %1328 = vmatmul.f32.gmra.mxu0 %v1327
      %v1329 = vpop.f32.mrf.mxu0
      %v1330 = vadd.f32 %v1239, %v1329
      %1331 = vdwg.mxu0
      %1332 = vmatpush.msra.mxu0 0.0
      %1333 = vmatpush.msra.mxu0 0.0
      %v1334 = vand.u32 %v255, 4294901760
      %v1335 = vsub.f32 %v255, %v1334
      %1336 = vmatpush.msra.mxu0 %v1335
      %v1337 = vand.u32 %v235, 4294901760
      %v1338 = vsub.f32 %v235, %v1337
      %1339 = vmatpush.msra.mxu0 %v1338
      %v1340 = vand.u32 %v231, 4294901760
      %v1341 = vsub.f32 %v231, %v1340
      %1342 = vmatpush.msra.mxu0 %v1341
      %v1343 = vand.u32 %v227, 4294901760
      %v1344 = vsub.f32 %v227, %v1343
      %1345 = vmatpush.msra.mxu0 %v1344
      %v1346 = vand.u32 %v223, 4294901760
      %v1347 = vsub.f32 %v223, %v1346
      %1348 = vmatpush.msra.mxu0 %v1347
      %v1349 = vand.u32 %v219, 4294901760
      %v1350 = vsub.f32 %v219, %v1349
      %1351 = vmatpush.msra.mxu0 %v1350
      %v1352 = vand.u32 %v215, 4294901760
      %v1353 = vsub.f32 %v215, %v1352
      %1354 = vmatpush.msra.mxu0 %v1353
      %v1355 = vand.u32 %v211, 4294901760
      %v1356 = vsub.f32 %v211, %v1355
      %1357 = vmatpush.msra.mxu0 %v1356
      %v1358 = vand.u32 %v207, 4294901760
      %v1359 = vsub.f32 %v207, %v1358
      %1360 = vmatpush.msra.mxu0 %v1359
      %v1361 = vand.u32 %v203, 4294901760
      %v1362 = vsub.f32 %v203, %v1361
      %1363 = vmatpush.msra.mxu0 %v1362
      %v1364 = vand.u32 %v199, 4294901760
      %v1365 = vsub.f32 %v199, %v1364
      %1366 = vmatpush.msra.mxu0 %v1365
      %v1367 = vand.u32 %v195, 4294901760
      %v1368 = vsub.f32 %v195, %v1367
      %1369 = vmatpush.msra.mxu0 %v1368
      %v1370 = vand.u32 %v191, 4294901760
      %v1371 = vsub.f32 %v191, %v1370
      %1372 = vmatpush.msra.mxu0 %v1371
      %v1373 = vand.u32 %v187, 4294901760
      %v1374 = vsub.f32 %v187, %v1373
      %1375 = vmatpush.msra.mxu0 %v1374
      %v1376 = vand.u32 %v242, 4294901760
      %v1377 = vsub.f32 %v242, %v1376
      %1378 = vmatmul.f32.gmra.mxu0 %v1377
      %v1379 = vpop.f32.mrf.mxu0
      %v1380 = vadd.f32 %v1330, %v1379
      %1381 = vdwg.mxu0
      %1382 = vmatpush.msra.mxu0 0.0
      %1383 = vmatpush.msra.mxu0 0.0
      %v1384 = vand.u32 %v255, 4294901760
      %1385 = vmatpush.msra.mxu0 %v1384
      %v1386 = vand.u32 %v235, 4294901760
      %1387 = vmatpush.msra.mxu0 %v1386
      %v1388 = vand.u32 %v231, 4294901760
      %1389 = vmatpush.msra.mxu0 %v1388
      %v1390 = vand.u32 %v227, 4294901760
      %1391 = vmatpush.msra.mxu0 %v1390
      %v1392 = vand.u32 %v223, 4294901760
      %1393 = vmatpush.msra.mxu0 %v1392
      %v1394 = vand.u32 %v219, 4294901760
      %1395 = vmatpush.msra.mxu0 %v1394
      %v1396 = vand.u32 %v215, 4294901760
      %1397 = vmatpush.msra.mxu0 %v1396
      %v1398 = vand.u32 %v211, 4294901760
      %1399 = vmatpush.msra.mxu0 %v1398
      %v1400 = vand.u32 %v207, 4294901760
      %1401 = vmatpush.msra.mxu0 %v1400
      %v1402 = vand.u32 %v203, 4294901760
      %1403 = vmatpush.msra.mxu0 %v1402
      %v1404 = vand.u32 %v199, 4294901760
      %1405 = vmatpush.msra.mxu0 %v1404
      %v1406 = vand.u32 %v195, 4294901760
      %1407 = vmatpush.msra.mxu0 %v1406
      %v1408 = vand.u32 %v191, 4294901760
      %1409 = vmatpush.msra.mxu0 %v1408
      %v1410 = vand.u32 %v187, 4294901760
      %1411 = vmatpush.msra.mxu0 %v1410
      %v1412 = vand.u32 %v242, 4294901760
      %v1413 = vsub.f32 %v242, %v1412
      %v1414 = vand.u32 %v1413, 4294901760
      %1415 = vmatmul.f32.gmra.mxu0 %v1414
      %v1416 = vpop.f32.mrf.mxu0
      %v1417 = vadd.f32 %v1380, %v1416
      %1418 = vdwg.mxu0
      %1419 = vmatpush.msra.mxu0 0.0
      %1420 = vmatpush.msra.mxu0 0.0
      %v1421 = vand.u32 %v255, 4294901760
      %v1422 = vsub.f32 %v255, %v1421
      %v1423 = vand.u32 %v1422, 4294901760
      %1424 = vmatpush.msra.mxu0 %v1423
      %v1425 = vand.u32 %v235, 4294901760
      %v1426 = vsub.f32 %v235, %v1425
      %v1427 = vand.u32 %v1426, 4294901760
      %1428 = vmatpush.msra.mxu0 %v1427
      %v1429 = vand.u32 %v231, 4294901760
      %v1430 = vsub.f32 %v231, %v1429
      %v1431 = vand.u32 %v1430, 4294901760
      %1432 = vmatpush.msra.mxu0 %v1431
      %v1433 = vand.u32 %v227, 4294901760
      %v1434 = vsub.f32 %v227, %v1433
      %v1435 = vand.u32 %v1434, 4294901760
      %1436 = vmatpush.msra.mxu0 %v1435
      %v1437 = vand.u32 %v223, 4294901760
      %v1438 = vsub.f32 %v223, %v1437
      %v1439 = vand.u32 %v1438, 4294901760
      %1440 = vmatpush.msra.mxu0 %v1439
      %v1441 = vand.u32 %v219, 4294901760
      %v1442 = vsub.f32 %v219, %v1441
      %v1443 = vand.u32 %v1442, 4294901760
      %1444 = vmatpush.msra.mxu0 %v1443
      %v1445 = vand.u32 %v215, 4294901760
      %v1446 = vsub.f32 %v215, %v1445
      %v1447 = vand.u32 %v1446, 4294901760
      %1448 = vmatpush.msra.mxu0 %v1447
      %v1449 = vand.u32 %v211, 4294901760
      %v1450 = vsub.f32 %v211, %v1449
      %v1451 = vand.u32 %v1450, 4294901760
      %1452 = vmatpush.msra.mxu0 %v1451
      %v1453 = vand.u32 %v207, 4294901760
      %v1454 = vsub.f32 %v207, %v1453
      %v1455 = vand.u32 %v1454, 4294901760
      %1456 = vmatpush.msra.mxu0 %v1455
      %v1457 = vand.u32 %v203, 4294901760
      %v1458 = vsub.f32 %v203, %v1457
      %v1459 = vand.u32 %v1458, 4294901760
      %1460 = vmatpush.msra.mxu0 %v1459
      %v1461 = vand.u32 %v199, 4294901760
      %v1462 = vsub.f32 %v199, %v1461
      %v1463 = vand.u32 %v1462, 4294901760
      %1464 = vmatpush.msra.mxu0 %v1463
      %v1465 = vand.u32 %v195, 4294901760
      %v1466 = vsub.f32 %v195, %v1465
      %v1467 = vand.u32 %v1466, 4294901760
      %1468 = vmatpush.msra.mxu0 %v1467
      %v1469 = vand.u32 %v191, 4294901760
      %v1470 = vsub.f32 %v191, %v1469
      %v1471 = vand.u32 %v1470, 4294901760
      %1472 = vmatpush.msra.mxu0 %v1471
      %v1473 = vand.u32 %v187, 4294901760
      %v1474 = vsub.f32 %v187, %v1473
      %v1475 = vand.u32 %v1474, 4294901760
      %1476 = vmatpush.msra.mxu0 %v1475
      %v1477 = vand.u32 %v242, 4294901760
      %1478 = vmatmul.f32.gmra.mxu0 %v1477
      %v1479 = vpop.f32.mrf.mxu0
      %v1480 = vadd.f32 %v1417, %v1479
      %1481 = vdwg.mxu0
      %1482 = vmatpush.msra.mxu0 0.0
      %1483 = vmatpush.msra.mxu0 0.0
      %v1484 = vand.u32 %v255, 4294901760
      %1485 = vmatpush.msra.mxu0 %v1484
      %v1486 = vand.u32 %v235, 4294901760
      %1487 = vmatpush.msra.mxu0 %v1486
      %v1488 = vand.u32 %v231, 4294901760
      %1489 = vmatpush.msra.mxu0 %v1488
      %v1490 = vand.u32 %v227, 4294901760
      %1491 = vmatpush.msra.mxu0 %v1490
      %v1492 = vand.u32 %v223, 4294901760
      %1493 = vmatpush.msra.mxu0 %v1492
      %v1494 = vand.u32 %v219, 4294901760
      %1495 = vmatpush.msra.mxu0 %v1494
      %v1496 = vand.u32 %v215, 4294901760
      %1497 = vmatpush.msra.mxu0 %v1496
      %v1498 = vand.u32 %v211, 4294901760
      %1499 = vmatpush.msra.mxu0 %v1498
      %v1500 = vand.u32 %v207, 4294901760
      %1501 = vmatpush.msra.mxu0 %v1500
      %v1502 = vand.u32 %v203, 4294901760
      %1503 = vmatpush.msra.mxu0 %v1502
      %v1504 = vand.u32 %v199, 4294901760
      %1505 = vmatpush.msra.mxu0 %v1504
      %v1506 = vand.u32 %v195, 4294901760
      %1507 = vmatpush.msra.mxu0 %v1506
      %v1508 = vand.u32 %v191, 4294901760
      %1509 = vmatpush.msra.mxu0 %v1508
      %v1510 = vand.u32 %v187, 4294901760
      %1511 = vmatpush.msra.mxu0 %v1510
      %v1512 = vand.u32 %v242, 4294901760
      %1513 = vmatmul.f32.gmra.mxu0 %v1512
      %v1514 = vpop.f32.mrf.mxu0
      %v1515 = vadd.f32 %v1480, %v1514
      %1516 = vdwg.mxu0
      %v1517 = vld [vmem:[%s171] sm:$0xf]
      %v1518 = vld [vmem:[%s171 + $0x8] sm:$0xf]
      %v1519 = vld [vmem:[%s171 + $0x10] sm:$0xf]
      %v1520 = vld [vmem:[%s171 + $0x18] sm:$0xf]
      %v1521 = vmul.f32 %v570, 1.442695
      %v1522 = vpow.pop %v1521
      %v1523 = vmul.f32 %v885, 1.442695
      %v1524 = vpow.pop %v1523
      %v1525 = vmul.f32 %v1200, 1.442695
      %v1526 = vpow.pop %v1525
      %v1527 = vmul.f32 %v1515, 1.442695
      %v1528 = vpow.pop %v1527
      %v1529 = vmul.f32 %v1517, %v1522
      %v1530 = vmul.f32 %v1518, %v1524
      %v1531 = vmul.f32 %v1519, %v1526
      %v1532 = vmul.f32 %v1520, %v1528
      %v1537 = vrot.slane %v1530, 4
      %v1538 = vrot.slane %v1532, 4
      %v1539 = vsel %vm244, %v1529, %v1537
      %v1540 = vsel %vm244, %v1531, %v1538
      %1543 = vst [vmem:[%s181] sm:$0xff] %v1539
      %1544 = vst [vmem:[%s181 + $0x8] sm:$0xff] %v1540
      %s1545 = smul.u32 4, %s18
      %p1546 = scmp.lt.s32.totalorder %s17, 1
      %s1547 = scalar_select %p1546, %s17, 1
      %p1548 = scmp.lt.s32.totalorder %s1545, 3
      %s1549 = scalar_select %p1548, %s1545, 3
      %s1550 = smul.addr %s1547, 4
      %s1551 = sadd.s32 %s1549, %s1550
      %s1552 = smul.addr %s1551, 4
      %s1553 = scalar_lea.vmem %s2, %s1552
      // Predicated region
      $region29: #{intra_voxel_conv.1} parent=27 // pred_check
        %p1554 = pneg %p94
      $region30: #{intra_voxel_conv.1} parent=27 // pred_check_branch
        %1556 = sbr.rel (%p1554) target = $region32
      $region31: #{intra_voxel_conv.1} parent=27 // pred_region
        %s1557 = smul.u32 4, %s18
      $region32: #{intra_voxel_conv.1} parent=27 // pred_fallthru
        _
    $region28: #{intra_voxel_conv.1} parent=5 // pred_fallthru
      _
    %p1558 = scmp.le.s32.totalorder 2, %s8
    // Predicated region
    $region33: #{intra_voxel_conv.1} parent=5 // pred_check
      %p1559 = pneg %p1558
    $region34: #{intra_voxel_conv.1} parent=5 // pred_check_branch
      %1561 = sbr.rel (%p1559) target = $region36
    $region35: #{intra_voxel_conv.1} parent=5 // pred_region
      %s1562 = ssub.s32 %s8, 2
      // Predicated region
      $region37: #{intra_voxel_conv.1} parent=35 // pred_check
        %p1563 = pneg %p100
      $region38: #{intra_voxel_conv.1} parent=35 // pred_check_branch
        %1565 = sbr.rel (%p1563) target = $region40
      $region39: #{intra_voxel_conv.1} parent=35 // pred_region
        %s1566 = smul.u32 4, %s20
        %p1567 = scmp.lt.s32.totalorder %s19, 1
        %s1568 = scalar_select %p1567, %s19, 1
        %p1569 = scmp.lt.s32.totalorder %s1566, 3
        %s1570 = scalar_select %p1569, %s1566, 3
        %s1571 = smul.addr %s1568, 4
        %s1572 = sadd.s32 %s1570, %s1571
        %s1573 = smul.addr %s1572, 4
        %s1574 = scalar_lea.vmem %s2, %s1573
      $region40: #{intra_voxel_conv.1} parent=35 // pred_fallthru
        _
    $region36: #{intra_voxel_conv.1} parent=5 // pred_fallthru
      _
  $region6: #{intra_voxel_conv.1} parent=0 // loop_footer
    %s12 = sadd.s32 1, %s8
  $region7: #{intra_voxel_conv.1} parent=0 // loop_footer_branch
    %7 = sbr.rel target = $region3
  $region8: #{intra_voxel_conv.1} parent=0 // loop_exit
    _

</llo_original>
